<compile_context>
chip_gen: v7x
topology: tpu7x:2x2x1
jax: 0.10.0
libtpu: 0.0.40
codegen_flags: <defaults>
</compile_context>

<pallas_src>
import functools

import jax
import jax.numpy as jnp
from jax.experimental import pallas as pl
from jax.experimental.pallas import tpu as pltpu


def _round_up(x, m):
    return ((x + m - 1) // m) * m


def _focal_loss_kernel(*refs, gamma, reduction, has_alpha, mask_rows):
    if has_alpha:
        logits_ref, targets_ref, alpha_ref, out_ref = refs
    else:
        logits_ref, targets_ref, out_ref = refs
        alpha_ref = None

    x = logits_ref[...].astype(jnp.float32)            # (TB, C) logits
    t = targets_ref[...]                               # (TB, 1) int32 class ids
    tb, c = x.shape

    # log_softmax pieces along the class (lane) axis, numerically stable.
    m = jnp.max(x, axis=1, keepdims=True)               # (TB, 1)
    z = x - m                                            # (TB, C)
    lse = jnp.log(jnp.sum(jnp.exp(z), axis=1, keepdims=True))   # (TB, 1)

    # Gather at the target class via a masked lane reduction (no float onehot,
    # no full logpt materialization).
    cls = jax.lax.broadcasted_iota(jnp.int32, (tb, c), 1)
    hit = cls == t                                       # (TB, C) mask

    z_t = jnp.sum(jnp.where(hit, z, 0.0), axis=1, keepdims=True)   # (TB, 1)
    logpt_t = z_t - lse                                  # (TB, 1)
    pt_t = jnp.exp(logpt_t)                              # (TB, 1), single-column exp

    if has_alpha:
        a = alpha_ref[...].astype(jnp.float32)           # (1, C)
        at = jnp.sum(jnp.where(hit, a, 0.0), axis=1, keepdims=True)
        logpt_t = logpt_t * at                           # PyTorch quirk: alpha scales logpt

    base = jnp.maximum(1.0 - pt_t, 0.0)                  # clamp: safe pow for frac. gamma
    g = float(gamma)
    if g.is_integer() and 0.0 <= g <= 8.0:
        # Integer gamma -> unrolled VPU multiplies, keeps EUP free.
        w = jnp.ones_like(base)
        for _ in range(int(g)):
            w = w * base
    else:
        w = base ** g

    loss = -1.0 * w * logpt_t                            # (TB, 1)

    if mask_rows:
        # Padded rows carry target id == C (out of range) -> zero them out.
        loss = jnp.where(t < c, loss, 0.0)

    if reduction == "none":
        out_ref[...] = loss
    else:
        out_ref[...] = jnp.sum(loss) * jnp.ones((1, 1), jnp.float32)


def focal_loss(logits, targets, alpha=None, gamma=2.0, reduction="mean",
               vmem_budget_bytes=32 * 1024 * 1024):
    """Pallas TPU implementation of FocalLoss.forward.

    logits:  (B, C) float (any float dtype; kept native in HBM)
    targets: (B,)   int class indices
    alpha:   optional (C,) per-class weights
    """
    B, C = logits.shape
    targets2d = targets.astype(jnp.int32).reshape(B, 1)

    has_alpha = alpha is not None
    if has_alpha:
        alpha_arr = jnp.asarray(alpha, jnp.float32).reshape(1, C)

    # ---- Tile sizing: purely VMEM-byte-budget driven (no fixed row cap). ----
    # Per-row VMEM bytes: double-buffered native logits tile + ~4 live (TB, C_pad)
    # f32 intermediates (x, z, exp(z), masked select) + lane-padded (TB,1) columns
    # (targets / output).  C pads to 128 lanes in VMEM regardless of dtype.
    itemsize = jnp.dtype(logits.dtype).itemsize
    c_pad = _round_up(C, 128)
    per_row_bytes = c_pad * (2 * itemsize + 4 * 4) + 2 * 128 * 4
    tb_budget = max(8, (vmem_budget_bytes // per_row_bytes) // 8 * 8)

    b_ceil = _round_up(B, 8)
    tb = min(tb_budget, b_ceil)
    # v7x megacore: if the whole batch fits in one tile, split into >= 2 grid
    # steps so both TensorCores get work (cheap on 1-TC chips).
    if tb >= b_ceil and b_ceil >= 16:
        tb = _round_up(pl.cdiv(b_ceil, 2), 8)
    tb = max(8, tb)

    b_pad = _round_up(B, tb)
    ntiles = b_pad // tb

    if b_pad != B:
        logits = jnp.pad(logits, ((0, b_pad - B), (0, 0)))
        # Pad targets with an out-of-range class id; the kernel zeroes those rows.
        targets2d = jnp.pad(targets2d, ((0, b_pad - B), (0, 0)), constant_values=C)
    mask_rows = (b_pad != B) and reduction != "none"

    in_specs = [
        pl.BlockSpec((tb, C), lambda i: (i, 0)),   # logits tile (pipelined, native dtype)
        pl.BlockSpec((tb, 1), lambda i: (i, 0)),   # targets tile
    ]
    args = [logits, targets2d]
    if has_alpha:
        in_specs.append(pl.BlockSpec((1, C), lambda i: (0, 0)))   # alpha stays resident
        args.append(alpha_arr)

    if reduction in ("mean", "sum"):
        # Per-tile partial sums; tiny final reduce happens in plain JAX.
        out_shape = jax.ShapeDtypeStruct((ntiles, 1), jnp.float32)
        out_specs = pl.BlockSpec((1, 1), lambda i: (i, 0))
    else:  # 'none'
        out_shape = jax.ShapeDtypeStruct((b_pad, 1), jnp.float32)
        out_specs = pl.BlockSpec((tb, 1), lambda i: (i, 0))

    kernel = functools.partial(
        _focal_loss_kernel,
        gamma=float(gamma),
        reduction=reduction,
        has_alpha=has_alpha,
        mask_rows=mask_rows,
    )

    result = pl.pallas_call(
        kernel,
        out_shape=out_shape,
        grid=(ntiles,),
        in_specs=in_specs,
        out_specs=out_specs,
        compiler_params=pltpu.CompilerParams(
            dimension_semantics=("parallel",),          # shards tiles across v7x's 2 TCs
            vmem_limit_bytes=48 * 1024 * 1024),         # explicit scoped-VMEM ceiling
    )(*args)

    if reduction == "mean":
        return jnp.sum(result) / jnp.float32(B)
    if reduction == "sum":
        return jnp.sum(result)
    return result[:B, 0]


def _focal_loss_ref(logits, targets, alpha=None, gamma=2.0, reduction="mean"):
    """Pure-JAX reference mirroring the PyTorch module."""
    logpt = jax.nn.log_softmax(logits.astype(jnp.float32), axis=1)
    pt = jnp.exp(logpt)
    logpt_t = jnp.take_along_axis(logpt, targets[:, None], axis=1)[:, 0]
    pt_t = jnp.take_along_axis(pt, targets[:, None], axis=1)[:, 0]
    if alpha is not None:
        at = jnp.asarray(alpha, jnp.float32)[targets]
        logpt_t = logpt_t * at
    loss = -1.0 * (1.0 - pt_t) ** gamma * logpt_t
    if reduction == "mean":
        return loss.mean()
    if reduction == "sum":
        return loss.sum()
    return loss


if __name__ == "__main__":
    key = jax.random.PRNGKey(0)
    k_logits, k_targets = jax.random.split(key)

    B, C = 8, 16  # small (batch_size, num_classes)
    logits = jax.random.normal(k_logits, (B, C), dtype=jnp.float32)
    targets = jax.random.randint(k_targets, (B,), 0, C, dtype=jnp.int32)
    alpha = jnp.linspace(0.5, 1.5, C, dtype=jnp.float32)
    gamma = 2.0

    # f32 input, with alpha, all three reductions.
    for reduction in ("mean", "sum", "none"):
        out = jax.block_until_ready(
            focal_loss(logits, targets, alpha=alpha, gamma=gamma, reduction=reduction))
        ref = _focal_loss_ref(logits, targets, alpha=alpha, gamma=gamma, reduction=reduction)
        assert jnp.allclose(out, ref, rtol=1e-4, atol=1e-4), (reduction, out, ref)

    # Fractional gamma exercises the pow path.
    out = jax.block_until_ready(
        focal_loss(logits, targets, alpha=alpha, gamma=1.5, reduction="mean"))
    ref = _focal_loss_ref(logits, targets, alpha=alpha, gamma=1.5, reduction="mean")
    assert jnp.allclose(out, ref, rtol=1e-4, atol=1e-4), (out, ref)

    # bf16 input (native in HBM), alpha=None specialized kernel, padded batch
    # (B=10 -> tiles of 8, padded rows carry target id C and contribute 0).
    B2 = 10
    logits2 = jax.random.normal(k_logits, (B2, C), dtype=jnp.bfloat16)
    targets2 = jax.random.randint(k_targets, (B2,), 0, C, dtype=jnp.int32)
    for reduction in ("mean", "sum", "none"):
        out = jax.block_until_ready(
            focal_loss(logits2, targets2, alpha=None, gamma=gamma, reduction=reduction))
        ref = _focal_loss_ref(logits2, targets2, alpha=None, gamma=gamma, reduction=reduction)
        assert jnp.allclose(out, ref, rtol=1e-3, atol=1e-3), (reduction, out, ref)

    print("KERNEL_OK")
</pallas_src>

<mosaic_0001>
module attributes {stable_mosaic.version = 11 : i64} {
  func.func @_focal_loss_kernel(%arg0: i32, %arg1: memref<8x16xf32, #tpu.memory_space<vmem>>, %arg2: memref<8x1xi32, #tpu.memory_space<vmem>>, %arg3: memref<1x16xf32, #tpu.memory_space<vmem>>, %arg4: memref<1x1xf32, #tpu.memory_space<vmem>>) attributes {dimension_semantics = [#tpu.dimension_semantics<parallel>], iteration_bounds = array<i64: 1>, scalar_prefetch = 0 : i64, scratch_operands = 0 : i64, tpu.core_type = #tpu.core_type<tc>, window_params = [{transform_indices = @transform_0, window_bounds = array<i64: 8, 16>}, {transform_indices = @transform_1, window_bounds = array<i64: 8, 1>}, {pipeline_mode = #tpu.pipeline_mode<synchronous>, transform_indices = @transform_2, window_bounds = array<i64: 1, 16>}, {transform_indices = @transform_3, window_bounds = array<i64: 1, 1>}]} {
    %c0 = arith.constant 0 : index
    %c0_0 = arith.constant 0 : index
    %0 = vector.load %arg1[%c0, %c0_0] : memref<8x16xf32, #tpu.memory_space<vmem>>, vector<8x16xf32>
    %c0_1 = arith.constant 0 : index
    %c0_2 = arith.constant 0 : index
    %1 = vector.load %arg2[%c0_1, %c0_2] : memref<8x1xi32, #tpu.memory_space<vmem>>, vector<8x1xi32>
    %cst = arith.constant dense<0xFF800000> : vector<8xf32>
    %2 = vector.multi_reduction <maximumf>, %0, %cst [1] : vector<8x16xf32> to vector<8xf32>
    %3 = vector.shape_cast %2 : vector<8xf32> to vector<8x1xf32>
    %4 = vector.broadcast %3 : vector<8x1xf32> to vector<8x16xf32>
    %5 = arith.subf %0, %4 : vector<8x16xf32>
    %6 = math.exp %5 : vector<8x16xf32>
    %cst_3 = arith.constant dense<0.000000e+00> : vector<8xf32>
    %7 = vector.multi_reduction <add>, %6, %cst_3 [1] : vector<8x16xf32> to vector<8xf32>
    %8 = vector.shape_cast %7 : vector<8xf32> to vector<8x1xf32>
    %9 = math.log %8 : vector<8x1xf32>
    %10 = tpu.iota {dimensions = array<i32: 1>} : vector<8x16xi32>
    %11 = vector.broadcast %1 : vector<8x1xi32> to vector<8x16xi32>
    %12 = arith.cmpi eq, %10, %11 : vector<8x16xi32>
    %cst_4 = arith.constant 0.000000e+00 : f32
    %13 = vector.broadcast %cst_4 : f32 to vector<8x16xf32>
    %14 = arith.select %12, %5, %13 : vector<8x16xi1>, vector<8x16xf32>
    %cst_5 = arith.constant dense<0.000000e+00> : vector<8xf32>
    %15 = vector.multi_reduction <add>, %14, %cst_5 [1] : vector<8x16xf32> to vector<8xf32>
    %16 = vector.shape_cast %15 : vector<8xf32> to vector<8x1xf32>
    %17 = arith.subf %16, %9 : vector<8x1xf32>
    %18 = math.exp %17 : vector<8x1xf32>
    %c0_6 = arith.constant 0 : index
    %c0_7 = arith.constant 0 : index
    %19 = vector.load %arg3[%c0_6, %c0_7] : memref<1x16xf32, #tpu.memory_space<vmem>>, vector<1x16xf32>
    %cst_8 = arith.constant 0.000000e+00 : f32
    %20 = vector.shape_cast %19 : vector<1x16xf32> to vector<1x16xf32>
    %21 = vector.broadcast %20 : vector<1x16xf32> to vector<8x16xf32>
    %22 = vector.broadcast %cst_8 : f32 to vector<8x16xf32>
    %23 = arith.select %12, %21, %22 : vector<8x16xi1>, vector<8x16xf32>
    %cst_9 = arith.constant dense<0.000000e+00> : vector<8xf32>
    %24 = vector.multi_reduction <add>, %23, %cst_9 [1] : vector<8x16xf32> to vector<8xf32>
    %25 = vector.shape_cast %24 : vector<8xf32> to vector<8x1xf32>
    %26 = arith.mulf %17, %25 : vector<8x1xf32>
    %cst_10 = arith.constant 1.000000e+00 : f32
    %27 = vector.broadcast %cst_10 : f32 to vector<8x1xf32>
    %28 = arith.subf %27, %18 : vector<8x1xf32>
    %cst_11 = arith.constant 0.000000e+00 : f32
    %29 = vector.broadcast %cst_11 : f32 to vector<8x1xf32>
    %30 = arith.maximumf %28, %29 : vector<8x1xf32>
    %cst_12 = arith.constant 1.000000e+00 : f32
    %31 = vector.broadcast %cst_12 : f32 to vector<8x1xf32>
    %32 = arith.mulf %31, %30 : vector<8x1xf32>
    %33 = arith.mulf %32, %30 : vector<8x1xf32>
    %cst_13 = arith.constant -1.000000e+00 : f32
    %34 = vector.broadcast %cst_13 : f32 to vector<8x1xf32>
    %35 = arith.mulf %34, %33 : vector<8x1xf32>
    %36 = arith.mulf %35, %26 : vector<8x1xf32>
    %37 = vector.shape_cast %36 : vector<8x1xf32> to vector<1x8x1xf32>
    %cst_14 = arith.constant dense<0.000000e+00> : vector<1xf32>
    %38 = vector.multi_reduction <add>, %37, %cst_14 [1, 2] : vector<1x8x1xf32> to vector<1xf32>
    %39 = vector.shape_cast %38 : vector<1xf32> to vector<1x1x1xf32>
    %40 = vector.extract %39[0, 0, 0] : f32 from vector<1x1x1xf32>
    %cst_15 = arith.constant 1.000000e+00 : f32
    %41 = vector.broadcast %cst_15 : f32 to vector<1x1xf32>
    %42 = vector.broadcast %40 : f32 to vector<1x1xf32>
    %43 = arith.mulf %42, %41 : vector<1x1xf32>
    %c0_16 = arith.constant 0 : index
    %c0_17 = arith.constant 0 : index
    %44 = vector.load %arg4[%c0_16, %c0_17] : memref<1x1xf32, #tpu.memory_space<vmem>>, vector<1x1xf32>
    tpu.vector_store %arg4[%c0_16, %c0_17], %43 {strides = array<i32>} : memref<1x1xf32, #tpu.memory_space<vmem>>, vector<1x1xf32>,
    return
  }
  func.func @transform_0(%arg0: i32) -> (i32, i32) {
    %c0_i32 = arith.constant 0 : i32
    %c0_i32_0 = arith.constant 0 : i32
    return %arg0, %c0_i32 : i32, i32
  }
  func.func @transform_1(%arg0: i32) -> (i32, i32) {
    %c0_i32 = arith.constant 0 : i32
    %c0_i32_0 = arith.constant 0 : i32
    return %arg0, %c0_i32 : i32, i32
  }
  func.func @transform_2(%arg0: i32) -> (i32, i32) {
    %c0_i32 = arith.constant 0 : i32
    %c0_i32_0 = arith.constant 0 : i32
    %c0_i32_1 = arith.constant 0 : i32
    return %c0_i32, %c0_i32_0 : i32, i32
  }
  func.func @transform_3(%arg0: i32) -> (i32, i32) {
    %c0_i32 = arith.constant 0 : i32
    %c0_i32_0 = arith.constant 0 : i32
    return %arg0, %c0_i32 : i32, i32
  }
}

</mosaic_0001>

<llo_original>
// kernel: tpu_custom_call.1
$region0: #{tpu_custom_call.1}
  #allocation0 [shape = 'u32[]', space=smem, size = 0x4, offset = 0x4, fixed_abs, tag = 'smem constant byte address 0x4 - core index']
  #allocation1 [shape = 'u32[144,128]{1,0:T(1,128)}', space=vmem, size = 0x12000, scoped, tag = 'internal scratch']
  %s0 = inlined_call_operand.vmem [shape: f32[8,16], index: 0, kind: input, shape index: {}]
  %s1 = inlined_call_operand.vmem [shape: s32[8,1], index: 1, kind: input, shape index: {}]
  %s2 = inlined_call_operand.vmem [shape: f32[1,16], index: 2, kind: input, shape index: {}]
  %s3 = inlined_call_operand.hbm [shape: f32[1,1], index: 3, kind: output, shape index: {}]
  %s4 = sld [smem:[#allocation0]]
  $region22: #{tpu_custom_call.1} parent=0
    _
  %s6 = ssub.s32 1, %s4
  %s7 = scalar_select 0, %s6, %s4
  $region1: #{tpu_custom_call.1} parent=0
    #allocation2 [shape = 'u8[512]{0}', space=vmem, size = 0x400, scoped, tag = 'output window, operand 0, single buffered']
    #allocation3 [shape = 's32[1]{0}', space=sflag, size = 0x4, scoped, tag = 'scoped memory for tpu_custom_call.1']
    %8 = vsyncpa [#allocation3], 0
    // Predicated region
    $region2: #{tpu_custom_call.1} parent=1 // pred_check
      _
    $region3: #{tpu_custom_call.1} parent=1 // pred_check_branch
      %10 = sbr.rel (0) target = $region5
    $region4: #{tpu_custom_call.1} parent=1 // pred_region
      _
    $region5: #{tpu_custom_call.1} parent=1 // pred_fallthru
      _
    // Predicated region
    $region6: #{tpu_custom_call.1} parent=1 // pred_check
      _
    $region7: #{tpu_custom_call.1} parent=1 // pred_check_branch
      %12 = sbr.rel (0) target = $region9
    $region8: #{tpu_custom_call.1} parent=1 // pred_region
      _
    $region9: #{tpu_custom_call.1} parent=1 // pred_fallthru
      _
    // Predicated region
    $region10: #{tpu_custom_call.1} parent=1 // pred_check
      _
    $region11: #{tpu_custom_call.1} parent=1 // pred_check_branch
      %14 = sbr.rel (0) target = $region13
    $region12: #{tpu_custom_call.1} parent=1 // pred_region
      _
    $region13: #{tpu_custom_call.1} parent=1 // pred_fallthru
      _
    %v15 = vld [vmem:[%s0] sm:$0xff]
    %v16 = vld [vmem:[%s1] sm:$0xff]
    %vm17 = vcmask 130048
    %v18 = vsel %vm17, %v15, -inf
    %19 = vmax.xlane.f32.xlu0 %v18
    %v20 = vpop.xlane.xlu0 %19
    %v21 = vsub.f32 %v15, %v20
    %v22 = vmul.f32 %v21, 1.442695
    %v23 = vpow.pop %v22
    %v24 = vsel %vm17, %v23, 0.0
    %25 = vadd.xlane.f32.xlu0 %v24
    %v26 = vpop.xlane.xlu0 %25
    %v27 = vlog2.pop %v26
    %v28 = vmul.f32 %v27, 0.6931472
    %v29 = vlaneseq
    %v30 = vand.u32 %v29, 127
    %31 = vset.pattern.permute.xlu0 0
    %32 = vperm.xlu0 %31, %v16
    %v33 = vpop.permute.xlu0 %32
    %vm34 = vcmp.eq.s32.totalorder %v30, %v33
    %v35 = vsel %vm34, %v21, 0.0
    %v36 = vsel %vm17, %v35, 0.0
    %37 = vadd.xlane.f32.xlu0 %v36
    %v38 = vpop.xlane.xlu0 %37
    %v39 = vsub.f32 %v38, %v28
    %v40 = vmul.f32 %v39, 1.442695
    %v41 = vpow.pop %v40
    %v42 = vld [vmem:[%s2] sm:$0x1]
    %v44 = vlaneseq
    %v45 = vshrl.u32 %v44, 7
    %v46 = vsub.s32 0, %v45
    %v47 = vrot.slane %v42, %v46
    %v49 = vsel %vm34, %v47, 0.0
    %v50 = vsel %vm17, %v49, 0.0
    %51 = vadd.xlane.f32.xlu0 %v50
    %v52 = vpop.xlane.xlu0 %51
    %v53 = vmul.f32 %v39, %v52
    %v54 = vsub.f32 1.0, %v41
    %v55 = vmax.f32 %v54, 0.0
    %v56 = vmul.f32 %v55, %v55
    %v57 = vmul.f32 %v56, -1.0
    %v58 = vmul.f32 %v57, %v53
    %vm59 = vcmask 7168
    %v60 = vsel %vm59, %v58, 0.0
    %61 = vadd.xlane.f32.xlu0 %v60
    %v62 = vpop.xlane.xlu0 %61
    %v63 = vrot.slane %v62, 4
    %v64 = vadd.f32 %v62, %v63
    %v65 = vrot.slane %v64, 2
    %v66 = vadd.f32 %v64, %v65
    %v67 = vrot.slane %v66, 1
    %v68 = vadd.f32 %v66, %v67
    %s69 = vtos %v68
    %v70 = vstv %s69
    %vm71 = vcmask 0
    %72 = vst.msk [vmem:[#allocation2] sm:$0x1] %vm71, %v70
    // Predicated region
    $region14: #{tpu_custom_call.1} parent=1 // pred_check
      _
    $region15: #{tpu_custom_call.1} parent=1 // pred_check_branch
      %74 = sbr.rel (0) target = $region17
    $region16: #{tpu_custom_call.1} parent=1 // pred_region
      %s76 = ssub.s32 16, 16
      %77 = vsyncadd [#allocation3], %s76
      %s79 = sshll.u32 [#allocation2], 4
      %s80 = int_to_ptr.vmem [resolvable:$true] %s79
      %82 = dma.vmem_to_hbm [thread:$0]  %s80, 16, %s3, [#allocation3]
    $region17: #{tpu_custom_call.1} parent=1 // pred_fallthru
      _
    // Predicated region
    $region18: #{tpu_custom_call.1} parent=1 // pred_check
      _
    $region19: #{tpu_custom_call.1} parent=1 // pred_check_branch
      %84 = sbr.rel (0) target = $region21
    $region20: #{tpu_custom_call.1} parent=1 // pred_region
      %85 = dma.done [#allocation3], 16
    $region21: #{tpu_custom_call.1} parent=1 // pred_fallthru
      _
    %86 = vsyncpa [#allocation3], 1

</llo_original>
